<compile_context>
chip_gen: v7x
topology: tpu7x:2x2x1
jax: 0.10.0
libtpu: 0.0.40
codegen_flags: <defaults>
</compile_context>

<pallas_src>
from functools import partial

import jax
import jax.numpy as jnp
from jax.experimental import pallas as pl
from jax.experimental.pallas import tpu as pltpu


def _round_up(x: int, m: int) -> int:
    return (x + m - 1) // m * m


def _choose_tiles(n_rows, vocab, itemsize, tile_n_req, tile_v_req, budget_bytes):
    """Pick (tile_n, tile_v) so the double-buffered x tile fits `budget_bytes`."""
    sub = max(8, 32 // itemsize)  # sublane multiple for the x dtype (8 f32, 16 bf16)
    tile_n_req = max(sub, min(_round_up(int(tile_n_req), sub), _round_up(n_rows, sub)))

    def max_rows(tv):
        return max(sub, (budget_bytes // (2 * tv * itemsize)) // sub * sub)

    if tile_v_req is not None:
        tile_v = int(tile_v_req)
    else:
        tile_v = vocab
        # If the full vocab forces tiny row tiles, split the vocab into lane-aligned
        # chunks that divide V exactly (keeps the one-hot index math exact).
        if max_rows(vocab) < min(128, tile_n_req) and vocab % 128 == 0:
            d = vocab // 128
            for k in range(d, 0, -1):
                if d % k == 0 and 2 * tile_n_req * (128 * k) * itemsize <= budget_bytes:
                    tile_v = 128 * k
                    break

    tile_n = min(tile_n_req, max_rows(tile_v))
    return tile_n, tile_v


def _lm_criterion_kernel(tile_n, tile_v, x_ref, tgt_ref, mask_ref, num_ref, den_ref):
    i = pl.program_id(0)  # row-tile index  ("parallel": megacore-sharded on v7x)
    j = pl.program_id(1)  # vocab-tile index ("arbitrary": reduction, innermost)

    # target / mask are resident full arrays in VMEM (one DMA total) -> slice here.
    row0 = pl.multiple_of(i * tile_n, 8)
    tgt = tgt_ref[pl.ds(row0, tile_n), :]   # (tile_n, 1) int32
    m = mask_ref[pl.ds(row0, tile_n), :]    # (tile_n, 1) float32

    x = x_ref[...].astype(jnp.float32)      # cast in-kernel; HBM streams native dtype

    # One-hot gather of x[r, tgt[r]] restricted to this vocab block.
    col = jax.lax.broadcasted_iota(jnp.int32, x.shape, 1) + j * tile_v  # (tile_n, tile_v)
    hit = col == tgt                                                    # broadcast (tile_n,1)
    gathered = jnp.sum(jnp.where(hit, x, 0.0), axis=1, keepdims=True)   # (tile_n, 1)

    contrib = jnp.sum(-gathered * m)        # scalar partial for block (i, j)

    @pl.when(j == 0)
    def _():
        num_ref[...] = jnp.zeros((1, 1, 1), jnp.float32)
        den_ref[...] = jnp.sum(m).reshape(1, 1, 1)   # mask sum only counted once per row tile

    num_ref[...] += contrib.reshape(1, 1, 1)


def lm_criterion(input_x, target, mask, *, tile_n=512, tile_v=None,
                 vmem_budget_bytes=24 * 1024 * 1024):
    """input_x: (B, T, V) log-probs (any float dtype); target: (B, T) int; mask: (B, T)."""
    B, T, V = input_x.shape
    N = B * T

    x2 = input_x.reshape(N, V)                      # keep native dtype; cast in-kernel
    tgt2 = target.reshape(N, 1).astype(jnp.int32)
    m2 = mask.reshape(N, 1).astype(jnp.float32)

    itemsize = jnp.dtype(x2.dtype).itemsize
    tile_n, tile_v = _choose_tiles(N, V, itemsize, tile_n, tile_v, vmem_budget_bytes)
    assert tile_v == V or (V % tile_v == 0 and tile_v % 128 == 0), "bad vocab tile"

    # Pad rows so tile_n divides N; padded rows carry mask = 0 -> zero contribution.
    n_pad = _round_up(N, tile_n)
    if n_pad != N:
        pad = n_pad - N
        x2 = jnp.pad(x2, ((0, pad), (0, 0)))
        tgt2 = jnp.pad(tgt2, ((0, pad), (0, 0)))
        m2 = jnp.pad(m2, ((0, pad), (0, 0)))

    g_n = n_pad // tile_n
    g_v = V // tile_v if tile_v != V else 1

    # Explicit scoped-VMEM limit: double-buffered x tile + resident target/mask + slack.
    x_tile_bytes = tile_n * tile_v * itemsize
    aux_bytes = 2 * 2 * n_pad * 512          # (N,1) blocks pad the lane dim to 128
    vmem_limit = int(min(100 * 1024 * 1024,
                         max(32 * 1024 * 1024, 2 * x_tile_bytes + aux_bytes + (16 << 20))))

    num_part, den_part = pl.pallas_call(
        partial(_lm_criterion_kernel, tile_n, tile_v),
        out_shape=(jax.ShapeDtypeStruct((g_n, 1, 1), jnp.float32),
                   jax.ShapeDtypeStruct((g_n, 1, 1), jnp.float32)),
        grid_spec=pltpu.PrefetchScalarGridSpec(
            num_scalar_prefetch=0,
            grid=(g_n, g_v),
            in_specs=[
                pl.BlockSpec((tile_n, tile_v), lambda i, j: (i, j)),   # streamed x
                pl.BlockSpec((n_pad, 1), lambda i, j: (0, 0)),         # resident target
                pl.BlockSpec((n_pad, 1), lambda i, j: (0, 0)),         # resident mask
            ],
            out_specs=(
                pl.BlockSpec((1, 1, 1), lambda i, j: (i, 0, 0)),       # per-row-tile num
                pl.BlockSpec((1, 1, 1), lambda i, j: (i, 0, 0)),       # per-row-tile den
            ),
        ),
        compiler_params=pltpu.CompilerParams(
            dimension_semantics=("parallel", "arbitrary"),
            vmem_limit_bytes=vmem_limit,
        ),
    )(x2, tgt2, m2)

    # Tiny final reduction + divide in plain JAX (matches reference NaN-on-empty-mask).
    return jnp.sum(num_part) / jnp.sum(den_part)


def _reference(input_x, target, mask):
    B, T, V = input_x.shape
    x2 = input_x.reshape(-1, V).astype(jnp.float32)
    t2 = target.reshape(-1)
    m2 = mask.reshape(-1).astype(jnp.float32)
    gathered = jnp.take_along_axis(x2, t2[:, None], axis=1)[:, 0]
    return jnp.sum(-gathered * m2) / jnp.sum(m2)


if __name__ == "__main__":
    key = jax.random.PRNGKey(0)
    k1, k2, k3, k4, k5, k6 = jax.random.split(key, 6)

    # --- test 1: small f32 case (single row tile, full vocab in one block) ---
    B, T, V = 2, 8, 32
    input_x = jax.nn.log_softmax(jax.random.normal(k1, (B, T, V), jnp.float32), axis=-1)
    target = jax.random.randint(k2, (B, T), 0, V, dtype=jnp.int32)
    mask = (jax.random.uniform(k3, (B, T)) > 0.25).astype(jnp.float32)

    out = jax.block_until_ready(lm_criterion(input_x, target, mask))
    ref = _reference(input_x, target, mask)
    assert jnp.allclose(out, ref, rtol=1e-4, atol=1e-4), (out, ref)

    # --- test 2: bf16 input, several row tiles (parallel axis), vocab tiling,
    #             and a row count that needs padding (masked-out pad rows) ---
    B2, T2, V2 = 2, 37, 256
    x_bf = jax.nn.log_softmax(jax.random.normal(k4, (B2, T2, V2), jnp.float32),
                              axis=-1).astype(jnp.bfloat16)
    tgt_b = jax.random.randint(k5, (B2, T2), 0, V2, dtype=jnp.int32)
    m_b = (jax.random.uniform(k6, (B2, T2)) > 0.25).astype(jnp.float32)

    out2 = jax.block_until_ready(lm_criterion(x_bf, tgt_b, m_b, tile_n=16, tile_v=128))
    ref2 = _reference(x_bf, tgt_b, m_b)
    assert jnp.allclose(out2, ref2, rtol=1e-4, atol=1e-4), (out2, ref2)

    print("KERNEL_OK")
</pallas_src>

<mosaic_0001>
module attributes {stable_mosaic.version = 11 : i64} {
  func.func @_lm_criterion_kernel(%arg0: i32, %arg1: i32, %arg2: memref<16x32xf32, #tpu.memory_space<vmem>>, %arg3: memref<16x1xi32, #tpu.memory_space<vmem>>, %arg4: memref<16x1xf32, #tpu.memory_space<vmem>>, %arg5: memref<1x1x1xf32, #tpu.memory_space<vmem>>, %arg6: memref<1x1x1xf32, #tpu.memory_space<vmem>>) attributes {dimension_semantics = [#tpu.dimension_semantics<parallel>, #tpu.dimension_semantics<arbitrary>], iteration_bounds = array<i64: 1, 1>, scalar_prefetch = 0 : i64, scratch_operands = 0 : i64, tpu.core_type = #tpu.core_type<tc>, window_params = [{transform_indices = @transform_0, window_bounds = array<i64: 16, 32>}, {pipeline_mode = #tpu.pipeline_mode<synchronous>, transform_indices = @transform_1, window_bounds = array<i64: 16, 1>}, {pipeline_mode = #tpu.pipeline_mode<synchronous>, transform_indices = @transform_2, window_bounds = array<i64: 16, 1>}, {transform_indices = @transform_3, window_bounds = array<i64: 1, 1, 1>}, {transform_indices = @transform_4, window_bounds = array<i64: 1, 1, 1>}]} {
    %c16_i32 = arith.constant 16 : i32
    %0 = arith.muli %arg0, %c16_i32 : i32
    %1 = tpu.assume_multiple %0, 8 : i32
    %2 = arith.index_cast %1 : i32 to index
    %c0 = arith.constant 0 : index
    %3 = vector.load %arg3[%2, %c0] : memref<16x1xi32, #tpu.memory_space<vmem>>, vector<16x1xi32>
    %4 = arith.index_cast %1 : i32 to index
    %c0_0 = arith.constant 0 : index
    %5 = vector.load %arg4[%4, %c0_0] : memref<16x1xf32, #tpu.memory_space<vmem>>, vector<16x1xf32>
    %c0_1 = arith.constant 0 : index
    %c0_2 = arith.constant 0 : index
    %6 = vector.load %arg2[%c0_1, %c0_2] : memref<16x32xf32, #tpu.memory_space<vmem>>, vector<16x32xf32>
    %7 = tpu.iota {dimensions = array<i32: 1>} : vector<16x32xi32>
    %c32_i32 = arith.constant 32 : i32
    %8 = arith.muli %arg1, %c32_i32 : i32
    %9 = vector.broadcast %8 : i32 to vector<16x32xi32>
    %10 = arith.addi %7, %9 : vector<16x32xi32>
    %11 = vector.broadcast %3 : vector<16x1xi32> to vector<16x32xi32>
    %12 = arith.cmpi eq, %10, %11 : vector<16x32xi32>
    %cst = arith.constant 0.000000e+00 : f32
    %13 = vector.broadcast %cst : f32 to vector<16x32xf32>
    %14 = arith.select %12, %6, %13 : vector<16x32xi1>, vector<16x32xf32>
    %cst_3 = arith.constant dense<0.000000e+00> : vector<16xf32>
    %15 = vector.multi_reduction <add>, %14, %cst_3 [1] : vector<16x32xf32> to vector<16xf32>
    %16 = vector.shape_cast %15 : vector<16xf32> to vector<16x1xf32>
    %cst_4 = arith.constant 0.000000e+00 : f32
    %17 = vector.broadcast %cst_4 : f32 to vector<16x1xf32>
    %18 = arith.subf %17, %16 : vector<16x1xf32>
    %19 = arith.mulf %18, %5 : vector<16x1xf32>
    %20 = vector.shape_cast %19 : vector<16x1xf32> to vector<1x16x1xf32>
    %cst_5 = arith.constant dense<0.000000e+00> : vector<1xf32>
    %21 = vector.multi_reduction <add>, %20, %cst_5 [1, 2] : vector<1x16x1xf32> to vector<1xf32>
    %22 = vector.shape_cast %21 : vector<1xf32> to vector<1x1x1xf32>
    %23 = vector.extract %22[0, 0, 0] : f32 from vector<1x1x1xf32>
    %c0_i32 = arith.constant 0 : i32
    %24 = arith.cmpi eq, %arg1, %c0_i32 : i32
    %25 = arith.extui %24 : i1 to i32
    %c0_i32_6 = arith.constant 0 : i32
    %26 = arith.cmpi ne, %25, %c0_i32_6 : i32
    scf.if %26 {
      %cst_13 = arith.constant 0.000000e+00 : f32
      %31 = vector.broadcast %cst_13 : f32 to vector<1x1x1xf32>
      %c0_14 = arith.constant 0 : index
      %c0_15 = arith.constant 0 : index
      %c0_16 = arith.constant 0 : index
      %32 = vector.load %arg5[%c0_14, %c0_15, %c0_16] : memref<1x1x1xf32, #tpu.memory_space<vmem>>, vector<1x1x1xf32>
      tpu.vector_store %arg5[%c0_14, %c0_15, %c0_16], %31 {strides = array<i32>} : memref<1x1x1xf32, #tpu.memory_space<vmem>>, vector<1x1x1xf32>,
      %33 = vector.shape_cast %5 : vector<16x1xf32> to vector<1x16x1xf32>
      %cst_17 = arith.constant dense<0.000000e+00> : vector<1xf32>
      %34 = vector.multi_reduction <add>, %33, %cst_17 [1, 2] : vector<1x16x1xf32> to vector<1xf32>
      %35 = vector.shape_cast %34 : vector<1xf32> to vector<1x1x1xf32>
      %36 = vector.extract %35[0, 0, 0] : f32 from vector<1x1x1xf32>
      %37 = vector.broadcast %36 : f32 to vector<1x1x1xf32>
      %c0_18 = arith.constant 0 : index
      %c0_19 = arith.constant 0 : index
      %c0_20 = arith.constant 0 : index
      %38 = vector.load %arg6[%c0_18, %c0_19, %c0_20] : memref<1x1x1xf32, #tpu.memory_space<vmem>>, vector<1x1x1xf32>
      tpu.vector_store %arg6[%c0_18, %c0_19, %c0_20], %37 {strides = array<i32>} : memref<1x1x1xf32, #tpu.memory_space<vmem>>, vector<1x1x1xf32>,
    } else {
    }
    %c0_7 = arith.constant 0 : index
    %c0_8 = arith.constant 0 : index
    %c0_9 = arith.constant 0 : index
    %27 = vector.load %arg5[%c0_7, %c0_8, %c0_9] : memref<1x1x1xf32, #tpu.memory_space<vmem>>, vector<1x1x1xf32>
    %28 = vector.broadcast %23 : f32 to vector<1x1x1xf32>
    %29 = arith.addf %27, %28 : vector<1x1x1xf32>
    %c0_10 = arith.constant 0 : index
    %c0_11 = arith.constant 0 : index
    %c0_12 = arith.constant 0 : index
    %30 = vector.load %arg5[%c0_10, %c0_11, %c0_12] : memref<1x1x1xf32, #tpu.memory_space<vmem>>, vector<1x1x1xf32>
    tpu.vector_store %arg5[%c0_10, %c0_11, %c0_12], %29 {strides = array<i32>} : memref<1x1x1xf32, #tpu.memory_space<vmem>>, vector<1x1x1xf32>,
    return
  }
  func.func @transform_0(%arg0: i32, %arg1: i32) -> (i32, i32) {
    %c0_i32 = arith.constant 0 : i32
    return %arg0, %arg1 : i32, i32
  }
  func.func @transform_1(%arg0: i32, %arg1: i32) -> (i32, i32) {
    %c0_i32 = arith.constant 0 : i32
    %c0_i32_0 = arith.constant 0 : i32
    %c0_i32_1 = arith.constant 0 : i32
    return %c0_i32, %c0_i32_0 : i32, i32
  }
  func.func @transform_2(%arg0: i32, %arg1: i32) -> (i32, i32) {
    %c0_i32 = arith.constant 0 : i32
    %c0_i32_0 = arith.constant 0 : i32
    %c0_i32_1 = arith.constant 0 : i32
    return %c0_i32, %c0_i32_0 : i32, i32
  }
  func.func @transform_3(%arg0: i32, %arg1: i32) -> (i32, i32, i32) {
    %c0_i32 = arith.constant 0 : i32
    %c0_i32_0 = arith.constant 0 : i32
    %c0_i32_1 = arith.constant 0 : i32
    return %arg0, %c0_i32, %c0_i32_0 : i32, i32, i32
  }
  func.func @transform_4(%arg0: i32, %arg1: i32) -> (i32, i32, i32) {
    %c0_i32 = arith.constant 0 : i32
    %c0_i32_0 = arith.constant 0 : i32
    %c0_i32_1 = arith.constant 0 : i32
    return %arg0, %c0_i32, %c0_i32_0 : i32, i32, i32
  }
}

</mosaic_0001>

<llo_original>
// kernel: tpu_custom_call.1
$region0: #{tpu_custom_call.1}
  #allocation0 [shape = 'u32[]', space=smem, size = 0x4, offset = 0x4, fixed_abs, tag = 'smem constant byte address 0x4 - core index']
  #allocation1 [shape = 'u32[144,128]{1,0:T(1,128)}', space=vmem, size = 0x12000, scoped, tag = 'internal scratch']
  %s0 = inlined_call_operand.vmem [shape: f32[16,32], index: 0, kind: input, shape index: {}]
  %s1 = inlined_call_operand.vmem [shape: s32[16,1], index: 1, kind: input, shape index: {}]
  %s2 = inlined_call_operand.vmem [shape: f32[16,1], index: 2, kind: input, shape index: {}]
  %s3 = inlined_call_operand.hbm [shape: f32[1,1,1], index: 3, kind: output, shape index: {0}]
  %s4 = inlined_call_operand.hbm [shape: f32[1,1,1], index: 4, kind: output, shape index: {1}]
  %5 = xla_tuple %s3, %s4
  %s6 = sld [smem:[#allocation0]]
  $region34: #{tpu_custom_call.1} parent=0
    _
  %s8 = ssub.s32 1, %s6
  %s9 = scalar_select 0, %s8, %s6
  $region1: #{tpu_custom_call.1} parent=0
    #allocation2 [shape = 'u8[512]{0}', space=vmem, size = 0x400, scoped, tag = 'output window, operand 0, single buffered']
    #allocation3 [shape = 's32[1]{0}', space=sflag, size = 0x4, scoped, tag = 'scoped memory for tpu_custom_call.1']
    #allocation4 [shape = 'u8[512]{0}', space=vmem, size = 0x400, scoped, tag = 'output window, operand 1, single buffered']
    #allocation5 [shape = 's32[1]{0}', space=sflag, size = 0x4, scoped, tag = 'scoped memory for tpu_custom_call.1']
    %10 = vsyncpa [#allocation3], 0
    %11 = vsyncpa [#allocation5], 0
    // Predicated region
    $region2: #{tpu_custom_call.1} parent=1 // pred_check
      _
    $region3: #{tpu_custom_call.1} parent=1 // pred_check_branch
      %13 = sbr.rel (0) target = $region5
    $region4: #{tpu_custom_call.1} parent=1 // pred_region
      _
    $region5: #{tpu_custom_call.1} parent=1 // pred_fallthru
      _
    // Predicated region
    $region6: #{tpu_custom_call.1} parent=1 // pred_check
      _
    $region7: #{tpu_custom_call.1} parent=1 // pred_check_branch
      %15 = sbr.rel (0) target = $region9
    $region8: #{tpu_custom_call.1} parent=1 // pred_region
      _
    $region9: #{tpu_custom_call.1} parent=1 // pred_fallthru
      _
    // Predicated region
    $region10: #{tpu_custom_call.1} parent=1 // pred_check
      _
    $region11: #{tpu_custom_call.1} parent=1 // pred_check_branch
      %17 = sbr.rel (0) target = $region13
    $region12: #{tpu_custom_call.1} parent=1 // pred_region
      _
    $region13: #{tpu_custom_call.1} parent=1 // pred_fallthru
      _
    %s18 = smul.u32 0, 16
    %s19 = scalar_lea.vmem %s1, %s18
    %v20 = vld [vmem:[%s19] sm:$0xff]
    %v21 = vld [vmem:[%s19 + $0x8] sm:$0xff]
    %s22 = scalar_lea.vmem %s2, %s18
    %v23 = vld [vmem:[%s22] sm:$0xff]
    %v24 = vld [vmem:[%s22 + $0x8] sm:$0xff]
    %v25 = vld [vmem:[%s0] sm:$0xff]
    %v26 = vld [vmem:[%s0 + $0x8] sm:$0xff]
    %v27 = vlaneseq
    %v28 = vand.u32 %v27, 127
    %s29 = smul.u32 0, 32
    %v30 = vstv %s29
    %v31 = vadd.s32 %v28, %v30
    %32 = vset.pattern.permute.xlu0 0
    %33 = vperm.xlu0 %32, %v20
    %v34 = vpop.permute.xlu0 %33
    %35 = vset.pattern.permute.xlu0 0
    %36 = vperm.xlu0 %35, %v21
    %v37 = vpop.permute.xlu0 %36
    %vm38 = vcmp.eq.s32.totalorder %v31, %v34
    %vm39 = vcmp.eq.s32.totalorder %v31, %v37
    %v40 = vsel %vm38, %v25, 0.0
    %v41 = vsel %vm39, %v26, 0.0
    %vm42 = vcmask 261120
    %v43 = vsel %vm42, %v40, 0.0
    %44 = vadd.xlane.f32.xlu0 %v43
    %v45 = vpop.xlane.xlu0 %44
    %v46 = vsel %vm42, %v41, 0.0
    %47 = vadd.xlane.f32.xlu0 %v46
    %v48 = vpop.xlane.xlu0 %47
    %v49 = vsub.f32 0.0, %v45
    %v50 = vsub.f32 0.0, %v48
    %v51 = vmul.f32 %v49, %v23
    %v52 = vmul.f32 %v50, %v24
    %vm53 = vcmask 7168
    %v54 = vsel %vm53, %v51, 0.0
    %v55 = vsel %vm53, %v52, 0.0
    %v56 = vadd.f32 %v54, %v55
    %57 = vadd.xlane.f32.xlu0 %v56
    %v58 = vpop.xlane.xlu0 %57
    %v59 = vrot.slane %v58, 4
    %v60 = vadd.f32 %v58, %v59
    %v61 = vrot.slane %v60, 2
    %v62 = vadd.f32 %v60, %v61
    %v63 = vrot.slane %v62, 1
    %v64 = vadd.f32 %v62, %v63
    %s65 = vtos %v64
    %p66 = scmp.eq.s32.totalorder 0, 0
    // Predicated region
    $region14: #{tpu_custom_call.1} parent=1 // pred_check
      %p67 = pneg %p66
    $region15: #{tpu_custom_call.1} parent=1 // pred_check_branch
      %69 = sbr.rel (%p67) target = $region17
    $region16: #{tpu_custom_call.1} parent=1 // pred_region
      %vm70 = vcmask 0
      %71 = vst.msk [vmem:[#allocation2] sm:$0x1] %vm70, 0.0
      %v72 = vsel %vm53, %v23, 0.0
      %v73 = vsel %vm53, %v24, 0.0
      %v74 = vadd.f32 %v72, %v73
      %75 = vadd.xlane.f32.xlu0 %v74
      %v76 = vpop.xlane.xlu0 %75
      %v77 = vrot.slane %v76, 4
      %v78 = vadd.f32 %v76, %v77
      %v79 = vrot.slane %v78, 2
      %v80 = vadd.f32 %v78, %v79
      %v81 = vrot.slane %v80, 1
      %v82 = vadd.f32 %v80, %v81
      %s83 = vtos %v82
      %v84 = vstv %s83
      %85 = vst.msk [vmem:[#allocation4] sm:$0x1] %vm70, %v84
    $region17: #{tpu_custom_call.1} parent=1 // pred_fallthru
      _
    %v86 = vld [vmem:[#allocation2] sm:$0x1]
    %v87 = vstv %s65
    %v88 = vadd.f32 %v86, %v87
    %vm89 = vcmask 0
    %90 = vst.msk [vmem:[#allocation2] sm:$0x1] %vm89, %v88
    // Predicated region
    $region18: #{tpu_custom_call.1} parent=1 // pred_check
      _
    $region19: #{tpu_custom_call.1} parent=1 // pred_check_branch
      %92 = sbr.rel (0) target = $region21
    $region20: #{tpu_custom_call.1} parent=1 // pred_region
      %s94 = ssub.s32 16, 16
      %95 = vsyncadd [#allocation3], %s94
      %s97 = sshll.u32 [#allocation2], 4
      %s98 = int_to_ptr.vmem [resolvable:$true] %s97
      %100 = dma.vmem_to_hbm [thread:$0]  %s98, 16, %s3, [#allocation3]
    $region21: #{tpu_custom_call.1} parent=1 // pred_fallthru
      _
    // Predicated region
    $region22: #{tpu_custom_call.1} parent=1 // pred_check
      _
    $region23: #{tpu_custom_call.1} parent=1 // pred_check_branch
      %102 = sbr.rel (0) target = $region25
    $region24: #{tpu_custom_call.1} parent=1 // pred_region
      %s104 = ssub.s32 16, 16
      %105 = vsyncadd [#allocation5], %s104
      %s107 = sshll.u32 [#allocation4], 4
      %s108 = int_to_ptr.vmem [resolvable:$true] %s107
      %110 = dma.vmem_to_hbm [thread:$0]  %s108, 16, %s4, [#allocation5]
    $region25: #{tpu_custom_call.1} parent=1 // pred_fallthru
      _
    // Predicated region
    $region26: #{tpu_custom_call.1} parent=1 // pred_check
      _
    $region27: #{tpu_custom_call.1} parent=1 // pred_check_branch
      %112 = sbr.rel (0) target = $region29
    $region28: #{tpu_custom_call.1} parent=1 // pred_region
      %113 = dma.done [#allocation3], 16
    $region29: #{tpu_custom_call.1} parent=1 // pred_fallthru
      _
    // Predicated region
    $region30: #{tpu_custom_call.1} parent=1 // pred_check
      _
    $region31: #{tpu_custom_call.1} parent=1 // pred_check_branch
      %115 = sbr.rel (0) target = $region33
    $region32: #{tpu_custom_call.1} parent=1 // pred_region
      %116 = dma.done [#allocation5], 16
    $region33: #{tpu_custom_call.1} parent=1 // pred_fallthru
      _
    %117 = vsyncpa [#allocation3], 1
    %118 = vsyncpa [#allocation5], 1

</llo_original>
